<compile_context>
chip_gen: v6e
topology: v6e:2x2x1
jax: 0.10.0
libtpu: 0.0.40
codegen_flags: <defaults>
</compile_context>

<pallas_src>
import functools

import jax
import jax.numpy as jnp
from jax.experimental import pallas as pl
from jax.experimental.pallas import tpu as pltpu


def _round_up(a, b):
    return -(-a // b) * b


def _vmem_limit_bytes():
    """Scoped-VMEM limit to request: half of physical, capped at 64 MiB."""
    try:
        info = pltpu.get_tpu_info()
        cap = int(getattr(info, "vmem_capacity_bytes", 64 << 20))
    except Exception:  # pragma: no cover - conservative fallback
        cap = 64 << 20
    return int(min(cap // 2, 64 << 20))


def _pick_batch_pack(B, slice_io, slice_f32, tile_cap, vmem_budget):
    """Largest divisor P of B whose (P, C, HWp) tile fits the VMEM budget.

    Footprint ~= 2x input buf + 2x output buf (double-buffered pipeline) plus a few
    f32 per-element compute temps plus weights/headroom.  Prefers B // P >= 2 so the
    'parallel' grid axis can be sharded across v7x's two TensorCores."""
    def fits(p):
        tile = p * slice_io
        foot = 4 * tile + 3 * slice_f32 + (2 << 20)
        return tile <= tile_cap and foot <= vmem_budget

    divs = [p for p in range(1, B + 1) if B % p == 0 and fits(p)]
    if not divs:
        return None
    pref = [p for p in divs if B // p >= 2]
    return max(pref) if pref else max(divs)


def _pick_blocked(B, HWp, col_io, col_f32, tile_cap, vmem_budget):
    """Pick (P1, HWB) for the HW-blocked fallback path."""
    def fits(p, hwb):
        tile = p * hwb * col_io
        foot = 4 * tile + 3 * hwb * col_f32 + (2 << 20)
        return tile <= tile_cap and foot <= vmem_budget

    n = HWp // 128
    hwb = 128
    for d in range(1, n + 1):
        if n % d == 0 and fits(1, d * 128):
            hwb = d * 128
    divs = [p for p in range(1, B + 1) if B % p == 0 and fits(p, hwb)]
    if not divs:
        divs = [1]  # last resort: one batch element, one 128-lane spatial block
    pref = [p for p in divs if B // p >= 2]
    p1 = max(pref) if pref else max(divs)
    return p1, hwb


# --------------------------------------------------------------------------- kernels


def _scse_fused_kernel(cb_ref, x_ref, wc_ref, w1_ref, b1_ref, w2_ref, b2_ref,
                       o_ref, *, inv_hw):
    """Single-pass kernel: sSE + cSE fused as x * (s + z), P batch elements per step."""
    P = x_ref.shape[0]
    cb = cb_ref[0, 0]
    wc = wc_ref[0]            # (C, 1)  conv weight column
    w1 = w1_ref[...]          # (C2, C)
    b1 = b1_ref[...]          # (C2, 1)
    w2 = w2_ref[...]          # (C, C2)
    b2 = b2_ref[...]          # (C, 1)

    def body(p, carry):
        xp = x_ref[p].astype(jnp.float32)                         # (C, HWp)
        # sSE: per-pixel channel squeeze (VPU mul + sublane reduce -> (1, HWp)).
        s = jax.nn.sigmoid(jnp.sum(xp * wc, axis=0, keepdims=True) + cb)
        # cSE: global average pool over the (zero-padded) spatial axis -> tiny MLP.
        gap = jnp.sum(xp, axis=1, keepdims=True) * inv_hw          # (C, 1)
        h = jnp.dot(w1, gap, preferred_element_type=jnp.float32) + b1
        h = h * jnp.tanh(jax.nn.softplus(h))                       # Mish (stable)
        z = jax.nn.sigmoid(
            jnp.dot(w2, h, preferred_element_type=jnp.float32) + b2)   # (C, 1)
        # Fused gate: x*s + x*z == x*(s + z)  (one full-slice multiply).
        o_ref[p] = (xp * (s + z)).astype(o_ref.dtype)
        return carry

    jax.lax.fori_loop(0, P, body, 0, unroll=P <= 8)


def _cse_gap_kernel(x_ref, w1_ref, b1_ref, w2_ref, b2_ref, z_ref, acc_ref, *, inv_hw):
    """Fallback pass 1: accumulate GAP over spatial blocks, emit cSE gate z (C,1)/elem."""
    P = x_ref.shape[0]
    k = pl.program_id(1)

    @pl.when(k == 0)
    def _():
        acc_ref[...] = jnp.zeros_like(acc_ref)

    def accum(p, carry):
        acc_ref[p] += jnp.sum(x_ref[p].astype(jnp.float32), axis=1, keepdims=True)
        return carry

    jax.lax.fori_loop(0, P, accum, 0, unroll=P <= 8)

    @pl.when(k == pl.num_programs(1) - 1)
    def _():
        w1 = w1_ref[...]
        b1 = b1_ref[...]
        w2 = w2_ref[...]
        b2 = b2_ref[...]

        def finish(p, carry):
            gap = acc_ref[p] * inv_hw                               # (C, 1)
            h = jnp.dot(w1, gap, preferred_element_type=jnp.float32) + b1
            h = h * jnp.tanh(jax.nn.softplus(h))                    # Mish
            z_ref[p] = jax.nn.sigmoid(
                jnp.dot(w2, h, preferred_element_type=jnp.float32) + b2)
            return carry

        jax.lax.fori_loop(0, P, finish, 0, unroll=P <= 8)


def _scse_apply_kernel(cb_ref, x_ref, wc_ref, z_ref, o_ref):
    """Fallback pass 2: per-spatial-block sSE gate + precomputed cSE gate."""
    P = x_ref.shape[0]
    cb = cb_ref[0, 0]
    wc = wc_ref[0]            # (C, 1)

    def body(p, carry):
        xp = x_ref[p].astype(jnp.float32)                           # (C, HWB)
        s = jax.nn.sigmoid(jnp.sum(xp * wc, axis=0, keepdims=True) + cb)
        o_ref[p] = (xp * (s + z_ref[p])).astype(o_ref.dtype)
        return carry

    jax.lax.fori_loop(0, P, body, 0, unroll=P <= 8)


# --------------------------------------------------------------------------- wrapper


def scse_pallas(x, conv_w, conv_b, w1, b1, w2, b2, *, tile_cap_bytes=8 << 20):
    """x: (B, C, H, W). conv_w: (C,1), conv_b: (1,1),
    w1: (C//2, C), b1: (C//2, 1), w2: (C, C//2), b2: (C, 1)."""
    B, C, H, W = x.shape
    HW = H * W
    C2 = w1.shape[0]
    dtype = x.dtype
    itemsize = jnp.dtype(dtype).itemsize

    # Lane-dense spatial axis (unmasked vst / dense vregs); GAP divides by true HW.
    HWp = _round_up(HW, 128)
    sub_io = max(8, 32 // itemsize)                  # sublane tile height for x dtype
    Cr_io = _round_up(C, sub_io)                     # VMEM rows per (C, HWp) x slice
    Cr_f32 = _round_up(C, 8)
    slice_io = Cr_io * HWp * itemsize
    slice_f32 = Cr_f32 * HWp * 4
    inv_hw = 1.0 / float(HW)

    x3 = x.reshape(B, C, HW)
    if HWp != HW:
        x3 = jnp.pad(x3, ((0, 0), (0, 0), (0, HWp - HW)))

    # Weights stay in their natural (KB-sized) shapes; gate math runs in f32.
    wc = conv_w.reshape(1, C, 1).astype(jnp.float32)
    cb = conv_b.reshape(1, 1).astype(jnp.float32)
    w1f = w1.astype(jnp.float32)
    b1f = b1.astype(jnp.float32)
    w2f = w2.astype(jnp.float32)
    b2f = b2.astype(jnp.float32)

    vmem_limit = _vmem_limit_bytes()
    P = _pick_batch_pack(B, slice_io, slice_f32, tile_cap_bytes, vmem_limit)

    if P is not None:
        # --- single fused pass: grid over batch packs only.
        out3 = pl.pallas_call(
            functools.partial(_scse_fused_kernel, inv_hw=inv_hw),
            out_shape=jax.ShapeDtypeStruct((B, C, HWp), dtype),
            grid=(B // P,),
            in_specs=[
                pl.BlockSpec(memory_space=pltpu.MemorySpace.SMEM),   # conv bias scalar
                pl.BlockSpec((P, C, HWp), lambda i: (i, 0, 0)),      # x pack
                pl.BlockSpec((1, C, 1), lambda i: (0, 0, 0)),        # conv weight
                pl.BlockSpec((C2, C), lambda i: (0, 0)),             # linear1
                pl.BlockSpec((C2, 1), lambda i: (0, 0)),             # bias1
                pl.BlockSpec((C, C2), lambda i: (0, 0)),             # linear2
                pl.BlockSpec((C, 1), lambda i: (0, 0)),              # bias2
            ],
            out_specs=pl.BlockSpec((P, C, HWp), lambda i: (i, 0, 0)),
            compiler_params=pltpu.CompilerParams(
                dimension_semantics=("parallel",),
                vmem_limit_bytes=vmem_limit),
        )(cb, x3, wc, w1f, b1f, w2f, b2f)
    else:
        # --- HW-blocked fallback: no step holds the full (C, HW) slab.
        P1, HWB = _pick_blocked(B, HWp, Cr_io * itemsize, Cr_f32 * 4,
                                tile_cap_bytes, vmem_limit)
        BG, NH = B // P1, HWp // HWB

        # Pass 1: GAP accumulated across spatial blocks -> cSE gate z (B, C, 1) f32.
        z = pl.pallas_call(
            functools.partial(_cse_gap_kernel, inv_hw=inv_hw),
            out_shape=jax.ShapeDtypeStruct((B, C, 1), jnp.float32),
            grid=(BG, NH),
            in_specs=[
                pl.BlockSpec((P1, C, HWB), lambda i, k: (i, 0, k)),
                pl.BlockSpec((C2, C), lambda i, k: (0, 0)),
                pl.BlockSpec((C2, 1), lambda i, k: (0, 0)),
                pl.BlockSpec((C, C2), lambda i, k: (0, 0)),
                pl.BlockSpec((C, 1), lambda i, k: (0, 0)),
            ],
            out_specs=pl.BlockSpec((P1, C, 1), lambda i, k: (i, 0, 0)),
            scratch_shapes=[pltpu.VMEM((P1, C, 1), jnp.float32)],
            compiler_params=pltpu.CompilerParams(
                dimension_semantics=("parallel", "arbitrary"),
                vmem_limit_bytes=vmem_limit),
        )(x3, w1f, b1f, w2f, b2f)

        # Pass 2: per-block sSE gate + precomputed cSE gate, fused multiply.
        out3 = pl.pallas_call(
            _scse_apply_kernel,
            out_shape=jax.ShapeDtypeStruct((B, C, HWp), dtype),
            grid=(BG, NH),
            in_specs=[
                pl.BlockSpec(memory_space=pltpu.MemorySpace.SMEM),
                pl.BlockSpec((P1, C, HWB), lambda i, k: (i, 0, k)),
                pl.BlockSpec((1, C, 1), lambda i, k: (0, 0, 0)),
                pl.BlockSpec((P1, C, 1), lambda i, k: (i, 0, 0)),
            ],
            out_specs=pl.BlockSpec((P1, C, HWB), lambda i, k: (i, 0, k)),
            compiler_params=pltpu.CompilerParams(
                dimension_semantics=("parallel", "parallel"),
                vmem_limit_bytes=vmem_limit),
        )(cb, x3, wc, z)

    if HWp != HW:
        out3 = out3[:, :, :HW]
    return out3.reshape(B, C, H, W)


def scse_reference(x, conv_w, conv_b, w1, b1, w2, b2):
    """Pure-JAX reference matching the PyTorch forward."""
    B, C, H, W = x.shape
    s = jax.nn.sigmoid(
        jnp.einsum('bchw,c->bhw', x, conv_w[:, 0]) + conv_b[0, 0])[:, None]
    sse = x * s
    gap = x.reshape(B, C, -1).mean(axis=2)                        # (B, C)
    h = gap @ w1.T + b1[:, 0]
    h = h * jnp.tanh(jax.nn.softplus(h))                          # Mish
    z = jax.nn.sigmoid(h @ w2.T + b2[:, 0])                       # (B, C)
    cse = x * z[:, :, None, None]
    return sse + cse


if __name__ == "__main__":
    def make_params(key, C):
        C2 = max(C // 2, 1)
        ks = jax.random.split(key, 7)
        conv_w = (jax.random.normal(ks[0], (C, 1)) * 0.5).astype(jnp.float32)
        conv_b = (jax.random.normal(ks[1], (1, 1)) * 0.1).astype(jnp.float32)
        w1 = (jax.random.normal(ks[2], (C2, C)) * 0.5).astype(jnp.float32)
        b1 = (jax.random.normal(ks[3], (C2, 1)) * 0.1).astype(jnp.float32)
        b2 = (jax.random.normal(ks[5], (C, 1)) * 0.1).astype(jnp.float32)
        w2 = (jax.random.normal(ks[4], (C, C2)) * 0.5).astype(jnp.float32)
        return ks[6], (conv_w, conv_b, w1, b1, w2, b2)

    def check(x, params, **kw):
        out = jax.block_until_ready(scse_pallas(x, *params, **kw))
        ref = scse_reference(x, *params)
        assert out.shape == x.shape
        assert jnp.allclose(out, ref, rtol=1e-5, atol=1e-5), "mismatch vs reference"

    # 1) main fused path: B=2, C=4, 16x16 (HW=256 already lane-aligned).
    kx, params = make_params(jax.random.PRNGKey(0), 4)
    check(jax.random.normal(kx, (2, 4, 16, 16), dtype=jnp.float32), params)

    # 2) fused path with lane padding (7x7 -> 128) and non-multiple-of-8 channels.
    kx, params = make_params(jax.random.PRNGKey(1), 5)
    check(jax.random.normal(kx, (3, 5, 7, 7), dtype=jnp.float32), params)

    # 3) multi-element batch packing (P=2) with padded spatial axis.
    kx, params = make_params(jax.random.PRNGKey(2), 4)
    check(jax.random.normal(kx, (4, 4, 8, 8), dtype=jnp.float32), params)

    # 4) HW-blocked fallback path, forced by shrinking the per-step tile cap.
    kx, params = make_params(jax.random.PRNGKey(3), 4)
    check(jax.random.normal(kx, (2, 4, 16, 16), dtype=jnp.float32), params,
          tile_cap_bytes=4096)

    print("KERNEL_OK")
</pallas_src>

<mosaic_0001>
module attributes {stable_mosaic.version = 11 : i64} {
  func.func @_scse_fused_kernel(%arg0: i32, %arg1: memref<1x1xf32, #tpu.memory_space<smem>>, %arg2: memref<1x4x256xf32, #tpu.memory_space<vmem>>, %arg3: memref<1x4x1xf32, #tpu.memory_space<vmem>>, %arg4: memref<2x4xf32, #tpu.memory_space<vmem>>, %arg5: memref<2x1xf32, #tpu.memory_space<vmem>>, %arg6: memref<4x2xf32, #tpu.memory_space<vmem>>, %arg7: memref<4x1xf32, #tpu.memory_space<vmem>>, %arg8: memref<1x4x256xf32, #tpu.memory_space<vmem>>) attributes {dimension_semantics = [#tpu.dimension_semantics<parallel>], iteration_bounds = array<i64: 2>, scalar_prefetch = 0 : i64, scratch_operands = 0 : i64, tpu.core_type = #tpu.core_type<tc>, window_params = [{transform_indices = @transform_0, window_bounds = array<i64: 1, 1>}, {transform_indices = @transform_1, window_bounds = array<i64: 1, 4, 256>}, {pipeline_mode = #tpu.pipeline_mode<synchronous>, transform_indices = @transform_2, window_bounds = array<i64: 1, 4, 1>}, {pipeline_mode = #tpu.pipeline_mode<synchronous>, transform_indices = @transform_3, window_bounds = array<i64: 2, 4>}, {pipeline_mode = #tpu.pipeline_mode<synchronous>, transform_indices = @transform_4, window_bounds = array<i64: 2, 1>}, {pipeline_mode = #tpu.pipeline_mode<synchronous>, transform_indices = @transform_5, window_bounds = array<i64: 4, 2>}, {pipeline_mode = #tpu.pipeline_mode<synchronous>, transform_indices = @transform_6, window_bounds = array<i64: 4, 1>}, {transform_indices = @transform_7, window_bounds = array<i64: 1, 4, 256>}]} {
    %c0 = arith.constant 0 : index
    %c0_0 = arith.constant 0 : index
    %0 = memref.load %arg1[%c0, %c0_0] : memref<1x1xf32, #tpu.memory_space<smem>>
    %c0_1 = arith.constant 0 : index
    %c0_2 = arith.constant 0 : index
    %c0_3 = arith.constant 0 : index
    %1 = vector.load %arg3[%c0_1, %c0_2, %c0_3] : memref<1x4x1xf32, #tpu.memory_space<vmem>>, vector<1x4x1xf32>
    %2 = vector.shape_cast %1 : vector<1x4x1xf32> to vector<4x1xf32>
    %c0_4 = arith.constant 0 : index
    %c0_5 = arith.constant 0 : index
    %3 = vector.load %arg4[%c0_4, %c0_5] : memref<2x4xf32, #tpu.memory_space<vmem>>, vector<2x4xf32>
    %c0_6 = arith.constant 0 : index
    %c0_7 = arith.constant 0 : index
    %4 = vector.load %arg5[%c0_6, %c0_7] : memref<2x1xf32, #tpu.memory_space<vmem>>, vector<2x1xf32>
    %c0_8 = arith.constant 0 : index
    %c0_9 = arith.constant 0 : index
    %5 = vector.load %arg6[%c0_8, %c0_9] : memref<4x2xf32, #tpu.memory_space<vmem>>, vector<4x2xf32>
    %c0_10 = arith.constant 0 : index
    %c0_11 = arith.constant 0 : index
    %6 = vector.load %arg7[%c0_10, %c0_11] : memref<4x1xf32, #tpu.memory_space<vmem>>, vector<4x1xf32>
    %c0_i32 = arith.constant 0 : i32
    %7 = arith.index_cast %c0_i32 : i32 to index
    %c0_12 = arith.constant 0 : index
    %c0_13 = arith.constant 0 : index
    %8 = vector.load %arg2[%7, %c0_12, %c0_13] : memref<1x4x256xf32, #tpu.memory_space<vmem>>, vector<1x4x256xf32>
    %9 = vector.shape_cast %8 : vector<1x4x256xf32> to vector<4x256xf32>
    %10 = vector.broadcast %2 : vector<4x1xf32> to vector<4x256xf32>
    %11 = arith.mulf %9, %10 : vector<4x256xf32>
    %cst = arith.constant dense<0.000000e+00> : vector<256xf32>
    %12 = vector.multi_reduction <add>, %11, %cst [0] : vector<4x256xf32> to vector<256xf32>
    %13 = vector.shape_cast %12 : vector<256xf32> to vector<1x256xf32>
    %14 = vector.broadcast %0 : f32 to vector<1x256xf32>
    %15 = arith.addf %13, %14 : vector<1x256xf32>
    %16 = arith.negf %15 : vector<1x256xf32>
    %17 = math.exp %16 : vector<1x256xf32>
    %cst_14 = arith.constant 1.000000e+00 : f32
    %18 = vector.broadcast %cst_14 : f32 to vector<1x256xf32>
    %19 = arith.addf %18, %17 : vector<1x256xf32>
    %20 = arith.divf %18, %19 : vector<1x256xf32>
    %cst_15 = arith.constant dense<0.000000e+00> : vector<4xf32>
    %21 = vector.multi_reduction <add>, %9, %cst_15 [1] : vector<4x256xf32> to vector<4xf32>
    %22 = vector.shape_cast %21 : vector<4xf32> to vector<4x1xf32>
    %cst_16 = arith.constant 3.906250e-03 : f32
    %23 = vector.broadcast %cst_16 : f32 to vector<4x1xf32>
    %24 = arith.mulf %22, %23 : vector<4x1xf32>
    %cst_17 = arith.constant dense<0.000000e+00> : vector<2x1xf32>
    %25 = tpu.matmul %3, %24, %cst_17 {dimension_numbers = #tpu.dot_dimension_numbers<[1], [0], [0], [1], [0, 0, 1, 1], [], []>} : vector<2x4xf32>, vector<4x1xf32>, vector<2x1xf32> -> vector<2x1xf32>
    %26 = arith.addf %25, %4 : vector<2x1xf32>
    %cst_18 = arith.constant 0.000000e+00 : f32
    %27 = vector.broadcast %cst_18 : f32 to vector<2x1xf32>
    %28 = arith.maximumf %26, %27 : vector<2x1xf32>
    %29 = vector.broadcast %cst_18 : f32 to vector<2x1xf32>
    %30 = arith.subf %26, %29 : vector<2x1xf32>
    %31 = arith.cmpf one, %30, %30 : vector<2x1xf32>
    %32 = vector.broadcast %cst_18 : f32 to vector<2x1xf32>
    %33 = arith.addf %26, %32 : vector<2x1xf32>
    %34 = math.absf %30 : vector<2x1xf32>
    %cst_19 = arith.constant 0.000000e+00 : f32
    %35 = vector.broadcast %cst_19 : f32 to vector<2x1xf32>
    %36 = arith.subf %35, %34 : vector<2x1xf32>
    %37 = math.exp %36 : vector<2x1xf32>
    %38 = math.log1p %37 : vector<2x1xf32>
    %39 = arith.addf %28, %38 : vector<2x1xf32>
    %40 = arith.select %31, %33, %39 : vector<2x1xi1>, vector<2x1xf32>
    %41 = math.tanh %40 : vector<2x1xf32>
    %42 = arith.mulf %26, %41 : vector<2x1xf32>
    %cst_20 = arith.constant dense<0.000000e+00> : vector<4x1xf32>
    %43 = tpu.matmul %5, %42, %cst_20 {dimension_numbers = #tpu.dot_dimension_numbers<[1], [0], [0], [1], [0, 0, 1, 1], [], []>} : vector<4x2xf32>, vector<2x1xf32>, vector<4x1xf32> -> vector<4x1xf32>
    %44 = arith.addf %43, %6 : vector<4x1xf32>
    %45 = arith.negf %44 : vector<4x1xf32>
    %46 = math.exp %45 : vector<4x1xf32>
    %cst_21 = arith.constant 1.000000e+00 : f32
    %47 = vector.broadcast %cst_21 : f32 to vector<4x1xf32>
    %48 = arith.addf %47, %46 : vector<4x1xf32>
    %49 = arith.divf %47, %48 : vector<4x1xf32>
    %50 = vector.broadcast %20 : vector<1x256xf32> to vector<4x256xf32>
    %51 = vector.broadcast %49 : vector<4x1xf32> to vector<4x256xf32>
    %52 = arith.addf %50, %51 : vector<4x256xf32>
    %53 = arith.mulf %9, %52 : vector<4x256xf32>
    %54 = arith.index_cast %c0_i32 : i32 to index
    %c0_22 = arith.constant 0 : index
    %c0_23 = arith.constant 0 : index
    %55 = vector.load %arg8[%54, %c0_22, %c0_23] : memref<1x4x256xf32, #tpu.memory_space<vmem>>, vector<1x4x256xf32>
    %56 = vector.shape_cast %55 : vector<1x4x256xf32> to vector<4x256xf32>
    %57 = vector.shape_cast %53 : vector<4x256xf32> to vector<1x4x256xf32>
    tpu.vector_store %arg8[%54, %c0_22, %c0_23], %57 {strides = array<i32>} : memref<1x4x256xf32, #tpu.memory_space<vmem>>, vector<1x4x256xf32>,
    %c1_i32 = arith.constant 1 : i32
    return
  }
  func.func @transform_0(%arg0: i32) -> (i32, i32) {
    %c0_i32 = arith.constant 0 : i32
    %c0_i32_0 = arith.constant 0 : i32
    %c0_i32_1 = arith.constant 0 : i32
    return %c0_i32, %c0_i32_0 : i32, i32
  }
  func.func @transform_1(%arg0: i32) -> (i32, i32, i32) {
    %c0_i32 = arith.constant 0 : i32
    %c0_i32_0 = arith.constant 0 : i32
    %c0_i32_1 = arith.constant 0 : i32
    return %arg0, %c0_i32, %c0_i32_0 : i32, i32, i32
  }
  func.func @transform_2(%arg0: i32) -> (i32, i32, i32) {
    %c0_i32 = arith.constant 0 : i32
    %c0_i32_0 = arith.constant 0 : i32
    %c0_i32_1 = arith.constant 0 : i32
    %c0_i32_2 = arith.constant 0 : i32
    return %c0_i32, %c0_i32_0, %c0_i32_1 : i32, i32, i32
  }
  func.func @transform_3(%arg0: i32) -> (i32, i32) {
    %c0_i32 = arith.constant 0 : i32
    %c0_i32_0 = arith.constant 0 : i32
    %c0_i32_1 = arith.constant 0 : i32
    return %c0_i32, %c0_i32_0 : i32, i32
  }
  func.func @transform_4(%arg0: i32) -> (i32, i32) {
    %c0_i32 = arith.constant 0 : i32
    %c0_i32_0 = arith.constant 0 : i32
    %c0_i32_1 = arith.constant 0 : i32
    return %c0_i32, %c0_i32_0 : i32, i32
  }
  func.func @transform_5(%arg0: i32) -> (i32, i32) {
    %c0_i32 = arith.constant 0 : i32
    %c0_i32_0 = arith.constant 0 : i32
    %c0_i32_1 = arith.constant 0 : i32
    return %c0_i32, %c0_i32_0 : i32, i32
  }
  func.func @transform_6(%arg0: i32) -> (i32, i32) {
    %c0_i32 = arith.constant 0 : i32
    %c0_i32_0 = arith.constant 0 : i32
    %c0_i32_1 = arith.constant 0 : i32
    return %c0_i32, %c0_i32_0 : i32, i32
  }
  func.func @transform_7(%arg0: i32) -> (i32, i32, i32) {
    %c0_i32 = arith.constant 0 : i32
    %c0_i32_0 = arith.constant 0 : i32
    %c0_i32_1 = arith.constant 0 : i32
    return %arg0, %c0_i32, %c0_i32_0 : i32, i32, i32
  }
}

</mosaic_0001>

<llo_original>
// kernel: tpu_custom_call.1
$region0: #{tpu_custom_call.1}
  #allocation0 [shape = 'u32[]', space=smem, size = 0x4, offset = 0x4, fixed_abs, tag = 'smem constant byte address 0x4 - core index']
  #allocation1 [shape = 'u32[144,128]{1,0:T(1,128)}', space=vmem, size = 0x12000, scoped, tag = 'internal scratch']
  #allocation2 [shape = 'f32[1,1]{1,0:T(1,128)S(6)}', space=smem, size = 0x200, scoped, tag = 'scoped memory for tpu_custom_call.1']
  %s0 = inlined_call_operand.<no memory space> [shape: f32[1,1], index: 0, kind: input, shape index: {}]
  %s1 = inlined_call_operand.vmem [shape: f32[2,4,256], index: 1, kind: input, shape index: {}]
  %s2 = inlined_call_operand.vmem [shape: f32[1,4,1], index: 2, kind: input, shape index: {}]
  %s3 = inlined_call_operand.vmem [shape: f32[2,4], index: 3, kind: input, shape index: {}]
  %s4 = inlined_call_operand.vmem [shape: f32[2,1], index: 4, kind: input, shape index: {}]
  %s5 = inlined_call_operand.vmem [shape: f32[4,2], index: 5, kind: input, shape index: {}]
  %s6 = inlined_call_operand.vmem [shape: f32[4,1], index: 6, kind: input, shape index: {}]
  %s7 = inlined_call_operand.hbm [shape: f32[2,4,256], index: 7, kind: output, shape index: {}]
  %s8 = sld [smem:[#allocation0]]
  $region61: #{tpu_custom_call.1} parent=0
    _
  %s10 = ssub.s32 1, %s8
  %s11 = scalar_select 0, %s10, %s8
  %12 = sst [smem:[#allocation2]] %s0
  $region1: #{tpu_custom_call.1} parent=0
    #allocation3 [shape = 'u8[8192]{0}', space=vmem, size = 0x2000, scoped, tag = 'output window, operand 0']
    #allocation4 [shape = 's32[2]{0}', space=sflag, size = 0x8, scoped, tag = 'scoped memory for tpu_custom_call.1']
    %13 = vsyncpa [#allocation4], 0
    %s14 = scalar_lea.sflag [#allocation4], 1
    %15 = vsyncpa %s14, 0
    loop: start=0, step=1, limit=4
    $region2: #{tpu_custom_call.1} parent=1 // loop_pre_header
      _
    $region3: #{tpu_custom_call.1} parent=1 // loop_header
      %s17 = sphi 0, %s21
      %p18 = scmp.ge.s32.totalorder %s17, 4
      %s25 = sphi 0, %s25
      %s27 = sphi 0, %s25
      %s28 = sphi 0, %s27
      %s42 = sphi 0, %s28
      %s48 = sphi 0, %s50
      %s51 = sphi 0, %s48
      %s52 = sphi 0, %s51
      %s68 = sphi 0, %s52
      %s72 = sphi 0, %s72
      %s74 = sphi 0, %s72
      %s75 = sphi 0, %s74
      %s89 = sphi 0, %s75
      %s93 = sphi 0, %s93
      %s95 = sphi 0, %s93
      %s96 = sphi 0, %s95
      %s110 = sphi 0, %s96
      %s114 = sphi 0, %s114
      %s116 = sphi 0, %s114
      %s117 = sphi 0, %s116
      %s131 = sphi 0, %s117
      %s135 = sphi 0, %s135
      %s137 = sphi 0, %s135
      %s138 = sphi 0, %s137
      %s152 = sphi 0, %s138
      %s156 = sphi 0, %s156
      %s158 = sphi 0, %s156
      %s159 = sphi 0, %s158
      %s173 = sphi 0, %s159
      %s179 = sphi 0, %s181
      %s182 = sphi 0, %s179
      %s183 = sphi 0, %s182
      %s199 = sphi 0, %s183
    $region4: #{tpu_custom_call.1} parent=1 // loop_header_branch
      %20 = sbr.rel (%p18) target = $region8
    $region5: #{tpu_custom_call.1} parent=1 // loop_body
      %s22 = ssub.s32 %s17, 1
      %s23 = ssub.s32 %s17, 2
      %s24 = sadd.s32 %s17, 1
      %s26 = sadd.s32 %s25, 1
      %p29 = scmp.eq.s32.totalorder %s17, 1
      %p30 = scmp.ne.s32.totalorder %s25, %s27
      %p31 = scmp.eq.s32.totalorder %s17, 0
      %p32 = por %p30, %p31
      %p33 = scmp.ne.s32.totalorder %s25, %s27
      %p34 = scmp.eq.s32.totalorder %s22, 1
      %p35 = por %p33, %p34
      %p36 = scmp.ne.s32.totalorder %s27, %s28
      %p37 = scmp.eq.s32.totalorder %s22, 0
      %p38 = por %p36, %p37
      %p39 = scmp.ne.s32.totalorder %s27, %s28
      %p40 = scmp.eq.s32.totalorder %s23, 1
      %p41 = por %p39, %p40
      %p43 = scmp.ne.s32.totalorder %s28, %s42
      %p44 = scmp.eq.s32.totalorder %s23, 0
      %p45 = por %p43, %p44
      %s46 = ssub.s32 %s17, %s24
      %p47 = scmp.eq.s32.totalorder %s46, 0
      %s49 = sadd.s32 %s48, 1
      %s50 = scalar_select %p47, %s48, %s49
      %p53 = pneg %p47
      %p54 = scmp.eq.s32.totalorder %s17, 1
      %p55 = por %p53, %p54
      %p56 = scmp.ne.s32.totalorder %s48, %s51
      %p57 = scmp.eq.s32.totalorder %s17, 0
      %p58 = por %p56, %p57
      %p59 = scmp.ne.s32.totalorder %s48, %s51
      %p60 = scmp.eq.s32.totalorder %s22, 1
      %p61 = por %p59, %p60
      %p62 = scmp.ne.s32.totalorder %s51, %s52
      %p63 = scmp.eq.s32.totalorder %s22, 0
      %p64 = por %p62, %p63
      %p65 = scmp.ne.s32.totalorder %s51, %s52
      %p66 = scmp.eq.s32.totalorder %s23, 1
      %p67 = por %p65, %p66
      %p69 = scmp.ne.s32.totalorder %s52, %s68
      %p70 = scmp.eq.s32.totalorder %s23, 0
      %p71 = por %p69, %p70
      %s73 = sadd.s32 %s72, 1
      %p76 = scmp.eq.s32.totalorder %s17, 1
      %p77 = scmp.ne.s32.totalorder %s72, %s74
      %p78 = scmp.eq.s32.totalorder %s17, 0
      %p79 = por %p77, %p78
      %p80 = scmp.ne.s32.totalorder %s72, %s74
      %p81 = scmp.eq.s32.totalorder %s22, 1
      %p82 = por %p80, %p81
      %p83 = scmp.ne.s32.totalorder %s74, %s75
      %p84 = scmp.eq.s32.totalorder %s22, 0
      %p85 = por %p83, %p84
      %p86 = scmp.ne.s32.totalorder %s74, %s75
      %p87 = scmp.eq.s32.totalorder %s23, 1
      %p88 = por %p86, %p87
      %p90 = scmp.ne.s32.totalorder %s75, %s89
      %p91 = scmp.eq.s32.totalorder %s23, 0
      %p92 = por %p90, %p91
      %s94 = sadd.s32 %s93, 1
      %p97 = scmp.eq.s32.totalorder %s17, 1
      %p98 = scmp.ne.s32.totalorder %s93, %s95
      %p99 = scmp.eq.s32.totalorder %s17, 0
      %p100 = por %p98, %p99
      %p101 = scmp.ne.s32.totalorder %s93, %s95
      %p102 = scmp.eq.s32.totalorder %s22, 1
      %p103 = por %p101, %p102
      %p104 = scmp.ne.s32.totalorder %s95, %s96
      %p105 = scmp.eq.s32.totalorder %s22, 0
      %p106 = por %p104, %p105
      %p107 = scmp.ne.s32.totalorder %s95, %s96
      %p108 = scmp.eq.s32.totalorder %s23, 1
      %p109 = por %p107, %p108
      %p111 = scmp.ne.s32.totalorder %s96, %s110
      %p112 = scmp.eq.s32.totalorder %s23, 0
      %p113 = por %p111, %p112
      %s115 = sadd.s32 %s114, 1
      %p118 = scmp.eq.s32.totalorder %s17, 1
      %p119 = scmp.ne.s32.totalorder %s114, %s116
      %p120 = scmp.eq.s32.totalorder %s17, 0
      %p121 = por %p119, %p120
      %p122 = scmp.ne.s32.totalorder %s114, %s116
      %p123 = scmp.eq.s32.totalorder %s22, 1
      %p124 = por %p122, %p123
      %p125 = scmp.ne.s32.totalorder %s116, %s117
      %p126 = scmp.eq.s32.totalorder %s22, 0
      %p127 = por %p125, %p126
      %p128 = scmp.ne.s32.totalorder %s116, %s117
      %p129 = scmp.eq.s32.totalorder %s23, 1
      %p130 = por %p128, %p129
      %p132 = scmp.ne.s32.totalorder %s117, %s131
      %p133 = scmp.eq.s32.totalorder %s23, 0
      %p134 = por %p132, %p133
      %s136 = sadd.s32 %s135, 1
      %p139 = scmp.eq.s32.totalorder %s17, 1
      %p140 = scmp.ne.s32.totalorder %s135, %s137
      %p141 = scmp.eq.s32.totalorder %s17, 0
      %p142 = por %p140, %p141
      %p143 = scmp.ne.s32.totalorder %s135, %s137
      %p144 = scmp.eq.s32.totalorder %s22, 1
      %p145 = por %p143, %p144
      %p146 = scmp.ne.s32.totalorder %s137, %s138
      %p147 = scmp.eq.s32.totalorder %s22, 0
      %p148 = por %p146, %p147
      %p149 = scmp.ne.s32.totalorder %s137, %s138
      %p150 = scmp.eq.s32.totalorder %s23, 1
      %p151 = por %p149, %p150
      %p153 = scmp.ne.s32.totalorder %s138, %s152
      %p154 = scmp.eq.s32.totalorder %s23, 0
      %p155 = por %p153, %p154
      %s157 = sadd.s32 %s156, 1
      %p160 = scmp.eq.s32.totalorder %s17, 1
      %p161 = scmp.ne.s32.totalorder %s156, %s158
      %p162 = scmp.eq.s32.totalorder %s17, 0
      %p163 = por %p161, %p162
      %p164 = scmp.ne.s32.totalorder %s156, %s158
      %p165 = scmp.eq.s32.totalorder %s22, 1
      %p166 = por %p164, %p165
      %p167 = scmp.ne.s32.totalorder %s158, %s159
      %p168 = scmp.eq.s32.totalorder %s22, 0
      %p169 = por %p167, %p168
      %p170 = scmp.ne.s32.totalorder %s158, %s159
      %p171 = scmp.eq.s32.totalorder %s23, 1
      %p172 = por %p170, %p171
      %p174 = scmp.ne.s32.totalorder %s159, %s173
      %p175 = scmp.eq.s32.totalorder %s23, 0
      %p176 = por %p174, %p175
      %s177 = ssub.s32 %s17, %s24
      %p178 = scmp.eq.s32.totalorder %s177, 0
      %s180 = sadd.s32 %s179, 1
      %s181 = scalar_select %p178, %s179, %s180
      %p184 = pneg %p178
      %p185 = scmp.eq.s32.totalorder %s17, 1
      %p186 = por %p184, %p185
      %p187 = scmp.ne.s32.totalorder %s179, %s182
      %p188 = scmp.eq.s32.totalorder %s17, 0
      %p189 = por %p187, %p188
      %p190 = scmp.ne.s32.totalorder %s179, %s182
      %p191 = scmp.eq.s32.totalorder %s22, 1
      %p192 = por %p190, %p191
      %p193 = scmp.ne.s32.totalorder %s182, %s183
      %p194 = scmp.eq.s32.totalorder %s22, 0
      %p195 = por %p193, %p194
      %p196 = scmp.ne.s32.totalorder %s182, %s183
      %p197 = scmp.eq.s32.totalorder %s23, 1
      %p198 = por %p196, %p197
      %p200 = scmp.ne.s32.totalorder %s183, %s199
      %p201 = scmp.eq.s32.totalorder %s23, 0
      %p202 = por %p200, %p201
      %p203 = scmp.le.s32.totalorder 1, %s17
      %p204 = scmp.lt.s32.totalorder %s17, 3
      %p205 = pnand %p203, %p204
      %p206 = pneg %p205
      // Predicated region
      $region9: #{tpu_custom_call.1} parent=5 // pred_check
        _
      $region10: #{tpu_custom_call.1} parent=5 // pred_check_branch
        %208 = sbr.rel (%p205) target = $region12
      $region11: #{tpu_custom_call.1} parent=5 // pred_region
        %s209 = ssub.s32 %s17, 1
        // Predicated region
        $region13: #{tpu_custom_call.1} parent=11 // pred_check
          %p210 = pneg %p38
        $region14: #{tpu_custom_call.1} parent=11 // pred_check_branch
          %212 = sbr.rel (%p210) target = $region16
        $region15: #{tpu_custom_call.1} parent=11 // pred_region
          _
        $region16: #{tpu_custom_call.1} parent=11 // pred_fallthru
          _
        // Predicated region
        $region17: #{tpu_custom_call.1} parent=11 // pred_check
          %p213 = pneg %p85
        $region18: #{tpu_custom_call.1} parent=11 // pred_check_branch
          %215 = sbr.rel (%p213) target = $region20
        $region19: #{tpu_custom_call.1} parent=11 // pred_region
          _
        $region20: #{tpu_custom_call.1} parent=11 // pred_fallthru
          _
        // Predicated region
        $region21: #{tpu_custom_call.1} parent=11 // pred_check
          %p216 = pneg %p106
        $region22: #{tpu_custom_call.1} parent=11 // pred_check_branch
          %218 = sbr.rel (%p216) target = $region24
        $region23: #{tpu_custom_call.1} parent=11 // pred_region
          _
        $region24: #{tpu_custom_call.1} parent=11 // pred_fallthru
          _
        // Predicated region
        $region25: #{tpu_custom_call.1} parent=11 // pred_check
          %p219 = pneg %p127
        $region26: #{tpu_custom_call.1} parent=11 // pred_check_branch
          %221 = sbr.rel (%p219) target = $region28
        $region27: #{tpu_custom_call.1} parent=11 // pred_region
          _
        $region28: #{tpu_custom_call.1} parent=11 // pred_fallthru
          _
        // Predicated region
        $region29: #{tpu_custom_call.1} parent=11 // pred_check
          %p222 = pneg %p148
        $region30: #{tpu_custom_call.1} parent=11 // pred_check_branch
          %224 = sbr.rel (%p222) target = $region32
        $region31: #{tpu_custom_call.1} parent=11 // pred_region
          _
        $region32: #{tpu_custom_call.1} parent=11 // pred_fallthru
          _
        // Predicated region
        $region33: #{tpu_custom_call.1} parent=11 // pred_check
          %p225 = pneg %p169
        $region34: #{tpu_custom_call.1} parent=11 // pred_check_branch
          %227 = sbr.rel (%p225) target = $region36
        $region35: #{tpu_custom_call.1} parent=11 // pred_region
          _
        $region36: #{tpu_custom_call.1} parent=11 // pred_fallthru
          _
      $region12: #{tpu_custom_call.1} parent=5 // pred_fallthru
        _
      %p228 = scmp.lt.s32.totalorder %s17, 2
      // Predicated region
      $region37: #{tpu_custom_call.1} parent=5 // pred_check
        %p229 = pneg %p228
      $region38: #{tpu_custom_call.1} parent=5 // pred_check_branch
        %231 = sbr.rel (%p229) target = $region40
      $region39: #{tpu_custom_call.1} parent=5 // pred_region
        // Predicated region
        $region41: #{tpu_custom_call.1} parent=39 // pred_check
          %p232 = pneg %p58
        $region42: #{tpu_custom_call.1} parent=39 // pred_check_branch
          %234 = sbr.rel (%p232) target = $region44
        $region43: #{tpu_custom_call.1} parent=39 // pred_region
          %p235 = scmp.lt.s32.totalorder %s17, 1
          %s236 = scalar_select %p235, %s17, 1
          %s237 = smul.addr %s236, 2
          %s238 = smul.addr %s237, 4
          %s239 = scalar_lea.vmem %s1, %s238
        $region44: #{tpu_custom_call.1} parent=39 // pred_fallthru
          _
      $region40: #{tpu_custom_call.1} parent=5 // pred_fallthru
        _
      %p240 = scmp.le.s32.totalorder 1, %s17
      %p241 = scmp.lt.s32.totalorder %s17, 3
      %p242 = pnand %p240, %p241
      %p243 = pneg %p242
      // Predicated region
      $region45: #{tpu_custom_call.1} parent=5 // pred_check
        _
      $region46: #{tpu_custom_call.1} parent=5 // pred_check_branch
        %245 = sbr.rel (%p242) target = $region48
      $region47: #{tpu_custom_call.1} parent=5 // pred_region
        %s246 = ssub.s32 %s17, 1
        %p247 = pneg %p38
        %p248 = pneg %p35
        %p249 = scmp.lt.s32.totalorder %s22, 1
        %s250 = scalar_select %p249, %s22, 1
        %s251 = smul.addr %s250, 2
        %s252 = smul.addr %s251, 4
        %s253 = scalar_lea.vmem %s1, %s252
        %p254 = pneg %p64
        %p255 = pneg %p61
        %p256 = pneg %p85
        %p257 = pneg %p82
        %p258 = pneg %p106
        %p259 = pneg %p103
        %p260 = pneg %p127
        %p261 = pneg %p124
        %p262 = pneg %p148
        %p263 = pneg %p145
        %p264 = pneg %p169
        %p265 = pneg %p166
        %p266 = pneg %p195
        %p267 = pneg %p192
        %s268 = sand.u32 %s182, 1
        %s269 = scalar_lea.sflag [#allocation4], %s268
        %s270 = sand.u32 %s182, 1
        %s271 = smul.addr %s270, 8
        %s272 = scalar_lea.vmem [#allocation3], %s271
        %p273 = scmp.lt.s32.totalorder %s22, 1
        %s274 = scalar_select %p273, %s22, 1
        %s275 = smul.addr %s274, 2
        %s276 = smul.addr %s275, 4
        %s277 = scalar_lea.vmem %s1, %s276
        %s278 = sld [smem:[#allocation2]]
        %v279 = vld [vmem:[%s2] sm:$0xf]
        %v280 = vld [vmem:[%s3] sm:$0x3]
        %v281 = vld [vmem:[%s4] sm:$0x3]
        %v282 = vld [vmem:[%s5] sm:$0xf]
        %v283 = vld [vmem:[%s6] sm:$0xf]
        %v284 = vld [vmem:[%s277] sm:$0xff]
        %286 = vset.pattern.permute.xlu0 0
        %287 = vperm.xlu0 %286, %v279
        %v288 = vpop.permute.xlu0 %287
        %v290 = vunpack.c.l.s4 839922192
        %v291 = vunpack.c.0.s8 %v290
        %v292 = vlaneseq
        %v293 = vshrl.u32 %v292, 7
        %v294 = vsub.s32 %v291, %v293
        %v295 = vrot.slane %v288, %v294
        %v297 = vmul.f32 %v284, %v295
        %v299 = vcombine.high %v297, %v297
        %vm301 = vcmask 1043456
        %v302 = vsel %vm301, %v297, 0.0
        %v303 = vrot.slane %v302, 4
        %v304 = vadd.f32 %v302, %v303
        %v305 = vrot.slane %v304, 2
        %v306 = vadd.f32 %v304, %v305
        %v307 = vrot.slane %v306, 1
        %v308 = vadd.f32 %v306, %v307
        %v309 = vsel %vm301, %v299, 0.0
        %v310 = vrot.slane %v309, 4
        %v311 = vadd.f32 %v309, %v310
        %v312 = vrot.slane %v311, 2
        %v313 = vadd.f32 %v311, %v312
        %v314 = vrot.slane %v313, 1
        %v315 = vadd.f32 %v313, %v314
        %v316 = vstv %s278
        %v317 = vadd.f32 %v308, %v316
        %v318 = vadd.f32 %v315, %v316
        %v319 = vxor.u32 %v317, 2147483648
        %v320 = vxor.u32 %v318, 2147483648
        %v321 = vmul.f32 %v319, 1.442695
        %v322 = vpow.pop %v321
        %v323 = vmul.f32 %v320, 1.442695
        %v324 = vpow.pop %v323
        %v325 = vadd.f32 %v322, 1.0
        %v326 = vadd.f32 %v324, 1.0
        %v327 = vrcp.pop %v325
        %v328 = vmul.f32 1.0, %v327
        %v329 = vrcp.pop %v326
        %v330 = vmul.f32 1.0, %v329
        %v332 = vcombine.high %v284, %v284
        %v334 = vsel %vm301, %v284, 0.0
        %v335 = vsel %vm301, %v332, 0.0
        %v336 = vadd.f32 %v334, %v335
        %337 = vadd.xlane.f32.xlu0 %v336
        %v338 = vpop.xlane.xlu0 %337
        %v339 = vmul.f32 %v338, 0.00390625
        %vm340 = vcmask 31744
        %v342 = vsel %vm340, %v280, 0
        %v345 = vsel %vm301, %v339, 0
        %347 = vmatprep.subr.mxu0 0.0
        %348 = vmatpush1.msra.mxu0 0.0
        %349 = vmatprep.subr.mxu0 0.0
        %350 = vmatpush1.msra.mxu0 0.0
        %351 = vmatprep.subr.mxu0 0.0
        %352 = vmatpush1.msra.mxu0 0.0
        %353 = vmatprep.subr.mxu0 0.0
        %354 = vmatpush1.msra.mxu0 0.0
        %355 = vmatprep.subr.mxu0 0.0
        %356 = vmatpush1.msra.mxu0 0.0
        %357 = vmatprep.subr.mxu0 0.0
        %358 = vmatpush1.msra.mxu0 0.0
        %359 = vmatprep.subr.mxu0 0.0
        %360 = vmatpush1.msra.mxu0 0.0
        %361 = vmatprep.subr.mxu0 0.0
        %362 = vmatpush1.msra.mxu0 0.0
        %363 = vmatprep.subr.mxu0 0.0
        %364 = vmatpush1.msra.mxu0 0.0
        %365 = vmatprep.subr.mxu0 0.0
        %366 = vmatpush1.msra.mxu0 0.0
        %367 = vmatprep.subr.mxu0 0.0
        %368 = vmatpush1.msra.mxu0 0.0
        %369 = vmatprep.subr.mxu0 0.0
        %370 = vmatpush1.msra.mxu0 0.0
        %371 = vmatprep.subr.mxu0 0.0
        %372 = vmatpush1.msra.mxu0 0.0
        %373 = vmatprep.subr.mxu0 0.0
        %374 = vmatpush1.msra.mxu0 0.0
        %375 = vmatprep.subr.mxu0 0.0
        %376 = vmatpush1.msra.mxu0 0.0
        %377 = vmatprep.subr.mxu0 0.0
        %378 = vmatpush1.msra.mxu0 %v345
        %379 = vmatprep.subr.mxu0 0.0
        %380 = vmatpush2.msra.mxu0 0.0
        %381 = vmatprep.subr.mxu0 0.0
        %382 = vmatpush2.msra.mxu0 0.0
        %383 = vmatprep.subr.mxu0 0.0
        %384 = vmatpush2.msra.mxu0 0.0
        %385 = vmatprep.subr.mxu0 0.0
        %386 = vmatpush2.msra.mxu0 0.0
        %387 = vmatprep.subr.mxu0 0.0
        %388 = vmatpush2.msra.mxu0 0.0
        %389 = vmatprep.subr.mxu0 0.0
        %390 = vmatpush2.msra.mxu0 0.0
        %391 = vmatprep.subr.mxu0 0.0
        %392 = vmatpush2.msra.mxu0 0.0
        %393 = vmatprep.subr.mxu0 0.0
        %394 = vmatpush2.msra.mxu0 0.0
        %395 = vmatprep.subr.mxu0 0.0
        %396 = vmatpush2.msra.mxu0 0.0
        %397 = vmatprep.subr.mxu0 0.0
        %398 = vmatpush2.msra.mxu0 0.0
        %399 = vmatprep.subr.mxu0 0.0
        %400 = vmatpush2.msra.mxu0 0.0
        %401 = vmatprep.subr.mxu0 0.0
        %402 = vmatpush2.msra.mxu0 0.0
        %403 = vmatprep.subr.mxu0 0.0
        %404 = vmatpush2.msra.mxu0 0.0
        %405 = vmatprep.subr.mxu0 0.0
        %406 = vmatpush2.msra.mxu0 0.0
        %407 = vmatprep.subr.mxu0 0.0
        %408 = vmatpush2.msra.mxu0 0.0
        %409 = vmatprep.subr.mxu0 0.0
        %410 = vmatpush2.msra.mxu0 0.0
        %411 = vmatprep.mubr.f32.mxu0 0.0
        %412 = vmatmul.mubr.f32.gmra.mxu0 %v342
        %v413 = vpop.f32.mrf.mxu0
        %v414 = vadd.f32 %v281, %v413
        %v415 = vpop.f32.mrf.mxu0
        %416 = vdwg.mxu0
        %v417 = vmax.f32 %v414, 0.0
        %vm418 = vcmp.ne.f32.partialorder %v414, %v414
        %v419 = vadd.f32 %v414, 0.0
        %v420 = vand.u32 2147483647, %v414
        %v421 = vsub.f32 0.0, %v420
        %v422 = vmul.f32 %v421, 1.442695
        %v423 = vpow.pop %v422
        %v424 = vadd.f32 %v423, 1.0
        %v425 = vlog2.pop %v424
        %v426 = vmul.f32 %v425, 0.6931472
        %v427 = vmul.f32 -0.5, %v423
        %v428 = vadd.f32 %v427, 1.0
        %v429 = vmul.f32 %v428, %v423
        %v430 = vand.u32 2147483647, %v423
        %vm431 = vcmp.lt.f32.partialorder %v430, 0.0004427343
        %v432 = vsel %vm431, %v429, %v426
        %v433 = vadd.f32 %v417, %v432
        %v434 = vsel %vm418, %v419, %v433
        %v435 = vtanh.pop %v434
        %v436 = vmul.f32 %v414, %v435
        %vm437 = vcmask 15360
        %v439 = vsel %vm437, %v282, 0
        %vm441 = vcmask 1041408
        %v443 = vsel %vm441, %v436, 0
        %445 = vmatprep.subr.mxu0 0.0
        %446 = vmatpush1.msra.mxu0 0.0
        %447 = vmatprep.subr.mxu0 0.0
        %448 = vmatpush1.msra.mxu0 0.0
        %449 = vmatprep.subr.mxu0 0.0
        %450 = vmatpush1.msra.mxu0 0.0
        %451 = vmatprep.subr.mxu0 0.0
        %452 = vmatpush1.msra.mxu0 0.0
        %453 = vmatprep.subr.mxu0 0.0
        %454 = vmatpush1.msra.mxu0 0.0
        %455 = vmatprep.subr.mxu0 0.0
        %456 = vmatpush1.msra.mxu0 0.0
        %457 = vmatprep.subr.mxu0 0.0
        %458 = vmatpush1.msra.mxu0 0.0
        %459 = vmatprep.subr.mxu0 0.0
        %460 = vmatpush1.msra.mxu0 0.0
        %461 = vmatprep.subr.mxu0 0.0
        %462 = vmatpush1.msra.mxu0 0.0
        %463 = vmatprep.subr.mxu0 0.0
        %464 = vmatpush1.msra.mxu0 0.0
        %465 = vmatprep.subr.mxu0 0.0
        %466 = vmatpush1.msra.mxu0 0.0
        %467 = vmatprep.subr.mxu0 0.0
        %468 = vmatpush1.msra.mxu0 0.0
        %469 = vmatprep.subr.mxu0 0.0
        %470 = vmatpush1.msra.mxu0 0.0
        %471 = vmatprep.subr.mxu0 0.0
        %472 = vmatpush1.msra.mxu0 0.0
        %473 = vmatprep.subr.mxu0 0.0
        %474 = vmatpush1.msra.mxu0 0.0
        %475 = vmatprep.subr.mxu0 0.0
        %476 = vmatpush1.msra.mxu0 %v443
        %477 = vmatprep.subr.mxu0 0.0
        %478 = vmatpush2.msra.mxu0 0.0
        %479 = vmatprep.subr.mxu0 0.0
        %480 = vmatpush2.msra.mxu0 0.0
        %481 = vmatprep.subr.mxu0 0.0
        %482 = vmatpush2.msra.mxu0 0.0
        %483 = vmatprep.subr.mxu0 0.0
        %484 = vmatpush2.msra.mxu0 0.0
        %485 = vmatprep.subr.mxu0 0.0
        %486 = vmatpush2.msra.mxu0 0.0
        %487 = vmatprep.subr.mxu0 0.0
        %488 = vmatpush2.msra.mxu0 0.0
        %489 = vmatprep.subr.mxu0 0.0
        %490 = vmatpush2.msra.mxu0 0.0
        %491 = vmatprep.subr.mxu0 0.0
        %492 = vmatpush2.msra.mxu0 0.0
        %493 = vmatprep.subr.mxu0 0.0
        %494 = vmatpush2.msra.mxu0 0.0
        %495 = vmatprep.subr.mxu0 0.0
        %496 = vmatpush2.msra.mxu0 0.0
        %497 = vmatprep.subr.mxu0 0.0
        %498 = vmatpush2.msra.mxu0 0.0
        %499 = vmatprep.subr.mxu0 0.0
        %500 = vmatpush2.msra.mxu0 0.0
        %501 = vmatprep.subr.mxu0 0.0
        %502 = vmatpush2.msra.mxu0 0.0
        %503 = vmatprep.subr.mxu0 0.0
        %504 = vmatpush2.msra.mxu0 0.0
        %505 = vmatprep.subr.mxu0 0.0
        %506 = vmatpush2.msra.mxu0 0.0
        %507 = vmatprep.subr.mxu0 0.0
        %508 = vmatpush2.msra.mxu0 0.0
        %509 = vmatprep.mubr.f32.mxu0 0.0
        %510 = vmatmul.mubr.f32.gmra.mxu0 %v439
        %v511 = vpop.f32.mrf.mxu0
        %v512 = vadd.f32 %v283, %v511
        %v513 = vpop.f32.mrf.mxu0
        %514 = vdwg.mxu0
        %v515 = vxor.u32 %v512, 2147483648
        %v516 = vmul.f32 %v515, 1.442695
        %v517 = vpow.pop %v516
        %v518 = vadd.f32 %v517, 1.0
        %v519 = vrcp.pop %v518
        %v520 = vmul.f32 1.0, %v519
        %522 = vset.pattern.permute.xlu0 0
        %523 = vperm.xlu0 %522, %v520
        %v524 = vpop.permute.xlu0 %523
        %v526 = vadd.f32 %v328, %v524
        %v527 = vadd.f32 %v330, %v524
        %v530 = vcombine.low %v526, %v527
        %v532 = vmul.f32 %v284, %v530
        %533 = vst [vmem:[%s272] sm:$0xff] %v532
        %s534 = sand.u32 %s182, 1
        %s535 = scalar_lea.sflag [#allocation4], %s534
        %s536 = sand.u32 %s182, 1
        %s537 = smul.addr %s536, 8
        %s538 = scalar_lea.vmem [#allocation3], %s537
        // Predicated region
        $region49: #{tpu_custom_call.1} parent=47 // pred_check
          %p539 = pneg %p192
        $region50: #{tpu_custom_call.1} parent=47 // pred_check_branch
          %541 = sbr.rel (%p539) target = $region52
        $region51: #{tpu_custom_call.1} parent=47 // pred_region
          %s543 = ssub.s32 128, 128
          %544 = vsyncadd %s535, %s543
          %s545 = smul.addr %s22, 2
          %s546 = smul.addr %s545, 64
          %s547 = scalar_lea.hbm %s7, %s546
          %s549 = sshll.u32 %s538, 4
          %s550 = int_to_ptr.vmem [resolvable:$true] %s549
          %552 = dma.vmem_to_hbm [thread:$0]  %s550, 128, %s547, %s535
        $region52: #{tpu_custom_call.1} parent=47 // pred_fallthru
          _
      $region48: #{tpu_custom_call.1} parent=5 // pred_fallthru
        _
      %p553 = scmp.le.s32.totalorder 2, %s17
      // Predicated region
      $region53: #{tpu_custom_call.1} parent=5 // pred_check
        %p554 = pneg %p553
      $region54: #{tpu_custom_call.1} parent=5 // pred_check_branch
        %556 = sbr.rel (%p554) target = $region56
      $region55: #{tpu_custom_call.1} parent=5 // pred_region
        %s557 = ssub.s32 %s17, 2
        // Predicated region
        $region57: #{tpu_custom_call.1} parent=55 // pred_check
          %p558 = pneg %p198
        $region58: #{tpu_custom_call.1} parent=55 // pred_check_branch
          %560 = sbr.rel (%p558) target = $region60
        $region59: #{tpu_custom_call.1} parent=55 // pred_region
          %s561 = sand.u32 %s183, 1
          %s562 = scalar_lea.sflag [#allocation4], %s561
          %s563 = sand.u32 %s183, 1
          %s564 = smul.addr %s563, 8
          %s565 = scalar_lea.vmem [#allocation3], %s564
          %566 = dma.done %s562, 128
        $region60: #{tpu_custom_call.1} parent=55 // pred_fallthru
          _
      $region56: #{tpu_custom_call.1} parent=5 // pred_fallthru
        _
    $region6: #{tpu_custom_call.1} parent=1 // loop_footer
      %s21 = sadd.s32 1, %s17
    $region7: #{tpu_custom_call.1} parent=1 // loop_footer_branch
      %16 = sbr.rel target = $region3
    $region8: #{tpu_custom_call.1} parent=1 // loop_exit
      _
    %567 = vsyncpa [#allocation4], 1
    %s568 = scalar_lea.sflag [#allocation4], 1
    %569 = vsyncpa %s568, 1

</llo_original>
